<compile_context>
chip_gen: v5e
topology: v5e:2x2
jax: 0.10.0
libtpu: 0.0.40
codegen_flags: <defaults>
</compile_context>

<pallas_src>
import jax
import jax.numpy as jnp
from jax.experimental import pallas as pl
from jax.experimental.pallas import tpu as pltpu


def _mlp_kernel(x_ref, w1_ref, b1_ref, w2_ref, b2_ref, w3_ref, b3_ref, o_ref):
    cdt = w1_ref.dtype  # matmul operand dtype (f32 or bf16); accumulation is f32
    # Layer 1: [tb, in] @ [in, 128] + [1, 128] -> ReLU
    h1 = jnp.dot(x_ref[...], w1_ref[...], preferred_element_type=jnp.float32)
    h1 = jnp.maximum(h1 + b1_ref[...], 0.0)
    # Layer 2: [tb, 128] @ [128, 64] + [1, 64] -> ReLU
    h2 = jnp.dot(h1.astype(cdt), w2_ref[...], preferred_element_type=jnp.float32)
    h2 = jnp.maximum(h2 + b2_ref[...], 0.0)
    # Layer 3: [tb, 64] @ [64, out_pad] + [1, out_pad]   (out_pad = 128-lane padded)
    out = jnp.dot(h2.astype(cdt), w3_ref[...], preferred_element_type=jnp.float32)
    o_ref[...] = (out + b3_ref[...]).astype(o_ref.dtype)


def _round_up(x, m):
    return ((x + m - 1) // m) * m


def _choose_block_b(B):
    """MXU-friendly batch tile: whole (padded) batch for small B, else >=2 grid
    steps (helps 2-TC chips) with the tile capped at 512 rows."""
    Bp = _round_up(B, 8)
    if Bp <= 256:
        return Bp
    return min(512, _round_up(pl.cdiv(Bp, 2), 8))


def nutrition_model_forward(x, params, *, block_b=None, compute_dtype=jnp.float32):
    """x: [B, input_size] float32. params: dict of w1,b1,w2,b2,w3,b3.

    compute_dtype: dtype fed to the MXU (use jnp.bfloat16 on v6e/v7x for ~2x
    matmul throughput); accumulation / bias / ReLU / output stay float32.
    """
    w1, b1, w2, b2, w3, b3 = (params[k] for k in ("w1", "b1", "w2", "b2", "w3", "b3"))
    B, in_dim = x.shape
    out_dim = w3.shape[1]

    # --- lane-pad the final layer to a full 128-lane output tile -------------
    out_pad = _round_up(max(out_dim, 128), 128)
    if out_pad != out_dim:
        w3p = jnp.zeros((w3.shape[0], out_pad), w3.dtype).at[:, :out_dim].set(w3)
        b3p = jnp.zeros((1, out_pad), b3.dtype).at[:, :out_dim].set(b3)
    else:
        w3p, b3p = w3, b3

    # --- pick / normalize the batch tile and pad the batch to a multiple -----
    if block_b is None:
        block_b = _choose_block_b(B)
    block_b = max(8, _round_up(block_b, 8))
    Bp = _round_up(B, block_b)
    xp = jnp.pad(x, ((0, Bp - B), (0, 0))) if Bp != B else x

    # --- cast matmul operands; keep biases / accumulation in f32 -------------
    xc = xp.astype(compute_dtype)
    w1c = w1.astype(compute_dtype)
    w2c = w2.astype(compute_dtype)
    w3c = w3p.astype(compute_dtype)
    b1f = b1.astype(jnp.float32)
    b2f = b2.astype(jnp.float32)
    b3f = b3p.astype(jnp.float32)

    grid = (Bp // block_b,)
    # Weights / biases are tiny: each grid step sees the full tensor (block 0,0).
    full2d = lambda a: pl.BlockSpec(a.shape, lambda i: (0, 0))

    out = pl.pallas_call(
        _mlp_kernel,
        out_shape=jax.ShapeDtypeStruct((Bp, out_pad), jnp.float32),
        grid_spec=pltpu.PrefetchScalarGridSpec(
            num_scalar_prefetch=0,
            grid=grid,
            in_specs=[
                pl.BlockSpec((block_b, in_dim), lambda i: (i, 0)),  # x tile
                full2d(w1c), full2d(b1f),
                full2d(w2c), full2d(b2f),
                full2d(w3c), full2d(b3f),
            ],
            out_specs=pl.BlockSpec((block_b, out_pad), lambda i: (i, 0)),
        ),
        compiler_params=pltpu.CompilerParams(
            dimension_semantics=("parallel",),  # batch tiles shard across TCs (v7x)
        ),
    )(xc, w1c, b1f, w2c, b2f, w3c, b3f)

    # strip batch padding and lane padding
    return out[:B, :out_dim]


def init_params(key, input_size, output_size):
    """Deterministic init mimicking PyTorch nn.Linear (uniform +/- 1/sqrt(fan_in))."""
    def linear_init(k, fan_in, fan_out):
        kw, kb = jax.random.split(k)
        bound = 1.0 / jnp.sqrt(fan_in)
        w = jax.random.uniform(kw, (fan_in, fan_out), jnp.float32, -bound, bound)
        b = jax.random.uniform(kb, (1, fan_out), jnp.float32, -bound, bound)
        return w, b

    k1, k2, k3 = jax.random.split(key, 3)
    w1, b1 = linear_init(k1, input_size, 128)
    w2, b2 = linear_init(k2, 128, 64)
    w3, b3 = linear_init(k3, 64, output_size)
    return {"w1": w1, "b1": b1, "w2": w2, "b2": b2, "w3": w3, "b3": b3}


def reference_forward(x, params):
    h1 = jnp.maximum(x @ params["w1"] + params["b1"], 0.0)
    h2 = jnp.maximum(h1 @ params["w2"] + params["b2"], 0.0)
    return h2 @ params["w3"] + params["b3"]


if __name__ == "__main__":
    input_size = 32
    output_size = 8
    batch = 16

    key = jax.random.PRNGKey(0)
    kx, kp = jax.random.split(key)
    x = jax.random.normal(kx, (batch, input_size), jnp.float32)
    params = init_params(kp, input_size, output_size)

    ref = reference_forward(x, params)

    # f32 matmul operands: bit-for-bit-ish vs reference
    out_f32 = jax.block_until_ready(
        nutrition_model_forward(x, params, compute_dtype=jnp.float32))
    assert out_f32.shape == (batch, output_size)
    assert jnp.allclose(out_f32, ref, atol=1e-5, rtol=1e-5), "f32 mismatch vs reference"

    # bf16 matmul operands (v6e/v7x fast path), f32 accumulation: loose tolerance
    out_bf16 = jax.block_until_ready(
        nutrition_model_forward(x, params, compute_dtype=jnp.bfloat16))
    assert out_bf16.shape == (batch, output_size)
    assert jnp.allclose(out_bf16, ref, atol=5e-2, rtol=5e-2), "bf16 mismatch vs reference"

    # ragged batch exercises the padding path (no B % block_b requirement)
    out_odd = jax.block_until_ready(
        nutrition_model_forward(x[:13], params, compute_dtype=jnp.float32))
    assert out_odd.shape == (13, output_size)
    assert jnp.allclose(out_odd, ref[:13], atol=1e-5, rtol=1e-5), "ragged-batch mismatch"

    print("KERNEL_OK")
</pallas_src>

<mosaic_0001>
module attributes {stable_mosaic.version = 11 : i64} {
  func.func @_mlp_kernel(%arg0: i32, %arg1: memref<16x32xf32, #tpu.memory_space<vmem>>, %arg2: memref<32x128xf32, #tpu.memory_space<vmem>>, %arg3: memref<1x128xf32, #tpu.memory_space<vmem>>, %arg4: memref<128x64xf32, #tpu.memory_space<vmem>>, %arg5: memref<1x64xf32, #tpu.memory_space<vmem>>, %arg6: memref<64x128xf32, #tpu.memory_space<vmem>>, %arg7: memref<1x128xf32, #tpu.memory_space<vmem>>, %arg8: memref<16x128xf32, #tpu.memory_space<vmem>>) attributes {dimension_semantics = [#tpu.dimension_semantics<parallel>], iteration_bounds = array<i64: 1>, scalar_prefetch = 0 : i64, scratch_operands = 0 : i64, tpu.core_type = #tpu.core_type<tc>, window_params = [{transform_indices = @transform_0, window_bounds = array<i64: 16, 32>}, {pipeline_mode = #tpu.pipeline_mode<synchronous>, transform_indices = @transform_1, window_bounds = array<i64: 32, 128>}, {pipeline_mode = #tpu.pipeline_mode<synchronous>, transform_indices = @transform_2, window_bounds = array<i64: 1, 128>}, {pipeline_mode = #tpu.pipeline_mode<synchronous>, transform_indices = @transform_3, window_bounds = array<i64: 128, 64>}, {pipeline_mode = #tpu.pipeline_mode<synchronous>, transform_indices = @transform_4, window_bounds = array<i64: 1, 64>}, {pipeline_mode = #tpu.pipeline_mode<synchronous>, transform_indices = @transform_5, window_bounds = array<i64: 64, 128>}, {pipeline_mode = #tpu.pipeline_mode<synchronous>, transform_indices = @transform_6, window_bounds = array<i64: 1, 128>}, {transform_indices = @transform_7, window_bounds = array<i64: 16, 128>}]} {
    %c0 = arith.constant 0 : index
    %c0_0 = arith.constant 0 : index
    %0 = vector.load %arg1[%c0, %c0_0] : memref<16x32xf32, #tpu.memory_space<vmem>>, vector<16x32xf32>
    %c0_1 = arith.constant 0 : index
    %c0_2 = arith.constant 0 : index
    %1 = vector.load %arg2[%c0_1, %c0_2] : memref<32x128xf32, #tpu.memory_space<vmem>>, vector<32x128xf32>
    %cst = arith.constant dense<0.000000e+00> : vector<16x128xf32>
    %2 = tpu.matmul %0, %1, %cst {dimension_numbers = #tpu.dot_dimension_numbers<[1], [0], [0], [1], [0, 0, 1, 1], [], []>} : vector<16x32xf32>, vector<32x128xf32>, vector<16x128xf32> -> vector<16x128xf32>
    %c0_3 = arith.constant 0 : index
    %c0_4 = arith.constant 0 : index
    %3 = vector.load %arg3[%c0_3, %c0_4] : memref<1x128xf32, #tpu.memory_space<vmem>>, vector<1x128xf32>
    %4 = vector.broadcast %3 : vector<1x128xf32> to vector<16x128xf32>
    %5 = arith.addf %2, %4 : vector<16x128xf32>
    %cst_5 = arith.constant 0.000000e+00 : f32
    %6 = vector.broadcast %cst_5 : f32 to vector<16x128xf32>
    %7 = arith.maximumf %5, %6 : vector<16x128xf32>
    %c0_6 = arith.constant 0 : index
    %c0_7 = arith.constant 0 : index
    %8 = vector.load %arg4[%c0_6, %c0_7] : memref<128x64xf32, #tpu.memory_space<vmem>>, vector<128x64xf32>
    %cst_8 = arith.constant dense<0.000000e+00> : vector<16x64xf32>
    %9 = tpu.matmul %7, %8, %cst_8 {dimension_numbers = #tpu.dot_dimension_numbers<[1], [0], [0], [1], [0, 0, 1, 1], [], []>} : vector<16x128xf32>, vector<128x64xf32>, vector<16x64xf32> -> vector<16x64xf32>
    %c0_9 = arith.constant 0 : index
    %c0_10 = arith.constant 0 : index
    %10 = vector.load %arg5[%c0_9, %c0_10] : memref<1x64xf32, #tpu.memory_space<vmem>>, vector<1x64xf32>
    %11 = vector.broadcast %10 : vector<1x64xf32> to vector<16x64xf32>
    %12 = arith.addf %9, %11 : vector<16x64xf32>
    %cst_11 = arith.constant 0.000000e+00 : f32
    %13 = vector.broadcast %cst_11 : f32 to vector<16x64xf32>
    %14 = arith.maximumf %12, %13 : vector<16x64xf32>
    %c0_12 = arith.constant 0 : index
    %c0_13 = arith.constant 0 : index
    %15 = vector.load %arg6[%c0_12, %c0_13] : memref<64x128xf32, #tpu.memory_space<vmem>>, vector<64x128xf32>
    %cst_14 = arith.constant dense<0.000000e+00> : vector<16x128xf32>
    %16 = tpu.matmul %14, %15, %cst_14 {dimension_numbers = #tpu.dot_dimension_numbers<[1], [0], [0], [1], [0, 0, 1, 1], [], []>} : vector<16x64xf32>, vector<64x128xf32>, vector<16x128xf32> -> vector<16x128xf32>
    %c0_15 = arith.constant 0 : index
    %c0_16 = arith.constant 0 : index
    %17 = vector.load %arg7[%c0_15, %c0_16] : memref<1x128xf32, #tpu.memory_space<vmem>>, vector<1x128xf32>
    %18 = vector.broadcast %17 : vector<1x128xf32> to vector<16x128xf32>
    %19 = arith.addf %16, %18 : vector<16x128xf32>
    %c0_17 = arith.constant 0 : index
    %c0_18 = arith.constant 0 : index
    %20 = vector.load %arg8[%c0_17, %c0_18] : memref<16x128xf32, #tpu.memory_space<vmem>>, vector<16x128xf32>
    tpu.vector_store %arg8[%c0_17, %c0_18], %19 {strides = array<i32>} : memref<16x128xf32, #tpu.memory_space<vmem>>, vector<16x128xf32>,
    return
  }
  func.func @transform_0(%arg0: i32) -> (i32, i32) {
    %c0_i32 = arith.constant 0 : i32
    %c0_i32_0 = arith.constant 0 : i32
    return %arg0, %c0_i32 : i32, i32
  }
  func.func @transform_1(%arg0: i32) -> (i32, i32) {
    %c0_i32 = arith.constant 0 : i32
    %c0_i32_0 = arith.constant 0 : i32
    %c0_i32_1 = arith.constant 0 : i32
    return %c0_i32, %c0_i32_0 : i32, i32
  }
  func.func @transform_2(%arg0: i32) -> (i32, i32) {
    %c0_i32 = arith.constant 0 : i32
    %c0_i32_0 = arith.constant 0 : i32
    %c0_i32_1 = arith.constant 0 : i32
    return %c0_i32, %c0_i32_0 : i32, i32
  }
  func.func @transform_3(%arg0: i32) -> (i32, i32) {
    %c0_i32 = arith.constant 0 : i32
    %c0_i32_0 = arith.constant 0 : i32
    %c0_i32_1 = arith.constant 0 : i32
    return %c0_i32, %c0_i32_0 : i32, i32
  }
  func.func @transform_4(%arg0: i32) -> (i32, i32) {
    %c0_i32 = arith.constant 0 : i32
    %c0_i32_0 = arith.constant 0 : i32
    %c0_i32_1 = arith.constant 0 : i32
    return %c0_i32, %c0_i32_0 : i32, i32
  }
  func.func @transform_5(%arg0: i32) -> (i32, i32) {
    %c0_i32 = arith.constant 0 : i32
    %c0_i32_0 = arith.constant 0 : i32
    %c0_i32_1 = arith.constant 0 : i32
    return %c0_i32, %c0_i32_0 : i32, i32
  }
  func.func @transform_6(%arg0: i32) -> (i32, i32) {
    %c0_i32 = arith.constant 0 : i32
    %c0_i32_0 = arith.constant 0 : i32
    %c0_i32_1 = arith.constant 0 : i32
    return %c0_i32, %c0_i32_0 : i32, i32
  }
  func.func @transform_7(%arg0: i32) -> (i32, i32) {
    %c0_i32 = arith.constant 0 : i32
    %c0_i32_0 = arith.constant 0 : i32
    return %arg0, %c0_i32 : i32, i32
  }
}

</mosaic_0001>

<llo_original>
// kernel: tpu_custom_call.1
$region0: #{tpu_custom_call.1}
  #allocation0 [shape = 'u32[]', space=smem, size = 0x4, offset = 0x4, fixed_abs, tag = 'smem constant byte address 0x4 - core index']
  #allocation1 [shape = 'u32[72,128]{1,0:T(1,128)}', space=vmem, size = 0x9000, scoped, tag = 'internal scratch']
  %s0 = inlined_call_operand.vmem [shape: f32[16,32], index: 0, kind: input, shape index: {}]
  %s1 = inlined_call_operand.vmem [shape: f32[32,128], index: 1, kind: input, shape index: {}]
  %s2 = inlined_call_operand.vmem [shape: f32[1,128], index: 2, kind: input, shape index: {}]
  %s3 = inlined_call_operand.vmem [shape: f32[128,64], index: 3, kind: input, shape index: {}]
  %s4 = inlined_call_operand.vmem [shape: f32[1,64], index: 4, kind: input, shape index: {}]
  %s5 = inlined_call_operand.vmem [shape: f32[64,128], index: 5, kind: input, shape index: {}]
  %s6 = inlined_call_operand.vmem [shape: f32[1,128], index: 6, kind: input, shape index: {}]
  %s7 = inlined_call_operand.hbm [shape: f32[16,128], index: 7, kind: output, shape index: {}]
  %s8 = sld [smem:[#allocation0]]
  $region38: #{tpu_custom_call.1} parent=0
    _
  %s10 = ssub.s32 1, %s8
  %s11 = scalar_select 0, %s10, %s8
  $region1: #{tpu_custom_call.1} parent=0
    #allocation2 [shape = 'u8[8192]{0}', space=vmem, size = 0x2000, scoped, tag = 'output window, operand 0, single buffered']
    #allocation3 [shape = 's32[1]{0}', space=sflag, size = 0x4, scoped, tag = 'scoped memory for tpu_custom_call.1']
    %12 = vsyncpa [#allocation3], 0
    // Predicated region
    $region2: #{tpu_custom_call.1} parent=1 // pred_check
      _
    $region3: #{tpu_custom_call.1} parent=1 // pred_check_branch
      %14 = sbr.rel (0) target = $region5
    $region4: #{tpu_custom_call.1} parent=1 // pred_region
      _
    $region5: #{tpu_custom_call.1} parent=1 // pred_fallthru
      _
    // Predicated region
    $region6: #{tpu_custom_call.1} parent=1 // pred_check
      _
    $region7: #{tpu_custom_call.1} parent=1 // pred_check_branch
      %16 = sbr.rel (0) target = $region9
    $region8: #{tpu_custom_call.1} parent=1 // pred_region
      _
    $region9: #{tpu_custom_call.1} parent=1 // pred_fallthru
      _
    // Predicated region
    $region10: #{tpu_custom_call.1} parent=1 // pred_check
      _
    $region11: #{tpu_custom_call.1} parent=1 // pred_check_branch
      %18 = sbr.rel (0) target = $region13
    $region12: #{tpu_custom_call.1} parent=1 // pred_region
      _
    $region13: #{tpu_custom_call.1} parent=1 // pred_fallthru
      _
    // Predicated region
    $region14: #{tpu_custom_call.1} parent=1 // pred_check
      _
    $region15: #{tpu_custom_call.1} parent=1 // pred_check_branch
      %20 = sbr.rel (0) target = $region17
    $region16: #{tpu_custom_call.1} parent=1 // pred_region
      _
    $region17: #{tpu_custom_call.1} parent=1 // pred_fallthru
      _
    // Predicated region
    $region18: #{tpu_custom_call.1} parent=1 // pred_check
      _
    $region19: #{tpu_custom_call.1} parent=1 // pred_check_branch
      %22 = sbr.rel (0) target = $region21
    $region20: #{tpu_custom_call.1} parent=1 // pred_region
      _
    $region21: #{tpu_custom_call.1} parent=1 // pred_fallthru
      _
    // Predicated region
    $region22: #{tpu_custom_call.1} parent=1 // pred_check
      _
    $region23: #{tpu_custom_call.1} parent=1 // pred_check_branch
      %24 = sbr.rel (0) target = $region25
    $region24: #{tpu_custom_call.1} parent=1 // pred_region
      _
    $region25: #{tpu_custom_call.1} parent=1 // pred_fallthru
      _
    // Predicated region
    $region26: #{tpu_custom_call.1} parent=1 // pred_check
      _
    $region27: #{tpu_custom_call.1} parent=1 // pred_check_branch
      %26 = sbr.rel (0) target = $region29
    $region28: #{tpu_custom_call.1} parent=1 // pred_region
      _
    $region29: #{tpu_custom_call.1} parent=1 // pred_fallthru
      _
    %v27 = vld [vmem:[%s0] sm:$0xff]
    %v28 = vld [vmem:[%s0 + $0x8] sm:$0xff]
    %v29 = vld [vmem:[%s1] sm:$0xff]
    %v30 = vld [vmem:[%s1 + $0x8] sm:$0xff]
    %v31 = vld [vmem:[%s1 + $0x10] sm:$0xff]
    %v32 = vld [vmem:[%s1 + $0x18] sm:$0xff]
    %v33 = vld [vmem:[%s2] sm:$0x1]
    %v35 = vperm.slane %v33, 0
    %vm37 = vcmask 261120
    %v39 = vsel %vm37, %v27, 0
    %v42 = vsel %vm37, %v28, 0
    %44 = vmatpush.msra.mxu0 0.0
    %45 = vmatpush.msra.mxu0 0.0
    %46 = vmatpush.msra.mxu0 0.0
    %47 = vmatpush.msra.mxu0 0.0
    %48 = vmatpush.msra.mxu0 0.0
    %49 = vmatpush.msra.mxu0 0.0
    %50 = vmatpush.msra.mxu0 0.0
    %51 = vmatpush.msra.mxu0 0.0
    %52 = vmatpush.msra.mxu0 0.0
    %53 = vmatpush.msra.mxu0 0.0
    %54 = vmatpush.msra.mxu0 0.0
    %55 = vmatpush.msra.mxu0 0.0
    %56 = vmatpush.msra.mxu0 %v32
    %57 = vmatpush.msra.mxu0 %v31
    %58 = vmatpush.msra.mxu0 %v30
    %59 = vmatpush.msra.mxu0 %v29
    %60 = vmatmul.f32.gmra.mxu0 %v39
    %v61 = vpop.f32.mrf.mxu0
    %v62 = vadd.f32 %v35, %v61
    %63 = vmatmul.f32.gmra.mxu0 %v42
    %v64 = vpop.f32.mrf.mxu0
    %v65 = vadd.f32 %v35, %v64
    %66 = vdwg.mxu0
    %v67 = vmax.f32 %v62, 0.0
    %v68 = vmax.f32 %v65, 0.0
    %v69 = vld [vmem:[%s3] sm:$0xff]
    %v70 = vld [vmem:[%s3 + $0x8] sm:$0xff]
    %v71 = vld [vmem:[%s3 + $0x10] sm:$0xff]
    %v72 = vld [vmem:[%s3 + $0x18] sm:$0xff]
    %v73 = vld [vmem:[%s3 + $0x20] sm:$0xff]
    %v74 = vld [vmem:[%s3 + $0x28] sm:$0xff]
    %v75 = vld [vmem:[%s3 + $0x30] sm:$0xff]
    %v76 = vld [vmem:[%s3 + $0x38] sm:$0xff]
    %v77 = vld [vmem:[%s3 + $0x40] sm:$0xff]
    %v78 = vld [vmem:[%s3 + $0x48] sm:$0xff]
    %v79 = vld [vmem:[%s3 + $0x50] sm:$0xff]
    %v80 = vld [vmem:[%s3 + $0x58] sm:$0xff]
    %v81 = vld [vmem:[%s3 + $0x60] sm:$0xff]
    %v82 = vld [vmem:[%s3 + $0x68] sm:$0xff]
    %v83 = vld [vmem:[%s3 + $0x70] sm:$0xff]
    %v84 = vld [vmem:[%s3 + $0x78] sm:$0xff]
    %v85 = vld [vmem:[%s4] sm:$0x1]
    %v87 = vperm.slane %v85, 0
    %89 = vmatpush.msra.mxu0 %v84
    %90 = vmatpush.msra.mxu0 %v83
    %91 = vmatpush.msra.mxu0 %v82
    %92 = vmatpush.msra.mxu0 %v81
    %93 = vmatpush.msra.mxu0 %v80
    %94 = vmatpush.msra.mxu0 %v79
    %95 = vmatpush.msra.mxu0 %v78
    %96 = vmatpush.msra.mxu0 %v77
    %97 = vmatpush.msra.mxu0 %v76
    %98 = vmatpush.msra.mxu0 %v75
    %99 = vmatpush.msra.mxu0 %v74
    %100 = vmatpush.msra.mxu0 %v73
    %101 = vmatpush.msra.mxu0 %v72
    %102 = vmatpush.msra.mxu0 %v71
    %103 = vmatpush.msra.mxu0 %v70
    %104 = vmatpush.msra.mxu0 %v69
    %105 = vmatmul.f32.gmra.mxu0 %v67
    %v106 = vpop.f32.mrf.mxu0
    %v107 = vadd.f32 %v87, %v106
    %108 = vmatmul.f32.gmra.mxu0 %v68
    %v109 = vpop.f32.mrf.mxu0
    %v110 = vadd.f32 %v87, %v109
    %111 = vdwg.mxu0
    %v112 = vmax.f32 %v107, 0.0
    %v113 = vmax.f32 %v110, 0.0
    %v114 = vld [vmem:[%s5] sm:$0xff]
    %v115 = vld [vmem:[%s5 + $0x8] sm:$0xff]
    %v116 = vld [vmem:[%s5 + $0x10] sm:$0xff]
    %v117 = vld [vmem:[%s5 + $0x18] sm:$0xff]
    %v118 = vld [vmem:[%s5 + $0x20] sm:$0xff]
    %v119 = vld [vmem:[%s5 + $0x28] sm:$0xff]
    %v120 = vld [vmem:[%s5 + $0x30] sm:$0xff]
    %v121 = vld [vmem:[%s5 + $0x38] sm:$0xff]
    %v122 = vld [vmem:[%s6] sm:$0x1]
    %v124 = vperm.slane %v122, 0
    %vm126 = vcmask 523264
    %v128 = vsel %vm126, %v112, 0
    %v131 = vsel %vm126, %v113, 0
    %133 = vmatpush.msra.mxu0 0.0
    %134 = vmatpush.msra.mxu0 0.0
    %135 = vmatpush.msra.mxu0 0.0
    %136 = vmatpush.msra.mxu0 0.0
    %137 = vmatpush.msra.mxu0 0.0
    %138 = vmatpush.msra.mxu0 0.0
    %139 = vmatpush.msra.mxu0 0.0
    %140 = vmatpush.msra.mxu0 0.0
    %141 = vmatpush.msra.mxu0 %v121
    %142 = vmatpush.msra.mxu0 %v120
    %143 = vmatpush.msra.mxu0 %v119
    %144 = vmatpush.msra.mxu0 %v118
    %145 = vmatpush.msra.mxu0 %v117
    %146 = vmatpush.msra.mxu0 %v116
    %147 = vmatpush.msra.mxu0 %v115
    %148 = vmatpush.msra.mxu0 %v114
    %149 = vmatmul.f32.gmra.mxu0 %v128
    %v150 = vpop.f32.mrf.mxu0
    %v151 = vadd.f32 %v124, %v150
    %152 = vmatmul.f32.gmra.mxu0 %v131
    %v153 = vpop.f32.mrf.mxu0
    %v154 = vadd.f32 %v124, %v153
    %155 = vdwg.mxu0
    %156 = vst [vmem:[#allocation2] sm:$0xff] %v151
    %157 = vst [vmem:[#allocation2 + $0x8] sm:$0xff] %v154
    // Predicated region
    $region30: #{tpu_custom_call.1} parent=1 // pred_check
      _
    $region31: #{tpu_custom_call.1} parent=1 // pred_check_branch
      %159 = sbr.rel (0) target = $region33
    $region32: #{tpu_custom_call.1} parent=1 // pred_region
      %161 = vsyncadd [#allocation3], 0
      %s162 = sshll.u32 [#allocation2], 4
      %s163 = int_to_ptr.vmem [resolvable:$true] %s162
      %s164 = sshll.u32 %s7, 4
      %s165 = int_to_ptr.hbm [resolvable:$true] %s164
      %170 = dma.vmem_to_hbm [thread:$0]  %s163, 256, %s165, [#allocation3], 128, 128, 8
    $region33: #{tpu_custom_call.1} parent=1 // pred_fallthru
      _
    // Predicated region
    $region34: #{tpu_custom_call.1} parent=1 // pred_check
      _
    $region35: #{tpu_custom_call.1} parent=1 // pred_check_branch
      %172 = sbr.rel (0) target = $region37
    $region36: #{tpu_custom_call.1} parent=1 // pred_region
      %174 = dma.done [#allocation3], 256
    $region37: #{tpu_custom_call.1} parent=1 // pred_fallthru
      _
    %175 = vsyncpa [#allocation3], 1

</llo_original>
